<compile_context>
chip_gen: v5e
topology: v5e:2x2
jax: 0.10.0
libtpu: 0.0.40
codegen_flags: <defaults>
</compile_context>

<pallas_src>
from functools import partial

import numpy as np
import jax
import jax.numpy as jnp
from jax.experimental import pallas as pl
from jax.experimental.pallas import tpu as pltpu


# --------------------------------------------------------------------------- #
# Pallas kernel
# --------------------------------------------------------------------------- #
def _mask_warp_kernel(m2_ref, flow_ref, m1_ref, notocc_ref, out_ref, *,
                      H, W, M, norm, tile):
    c = pl.program_id(1)                       # chunk index over target pixels

    @pl.when(c == 0)
    def _():
        out_ref[...] = jnp.zeros_like(out_ref)

    m2 = m2_ref[0]                             # (M*H, W)  source masks, rows=(m,y)
    f = flow_ref[0]                            # (2, tile) row 0 = dx, row 1 = dy
    m1 = m1_ref[0]                             # (M, tile)
    notocc = notocc_ref[0]                     # (1, tile)

    # Global flattened target-pixel index p = y*W + x for this chunk.
    p = (jax.lax.broadcasted_iota(jnp.int32, (1, tile), 1)
         + c * tile).astype(jnp.float32)                       # (1, tile)
    y_t = jnp.floor((p + 0.5) * jnp.float32(1.0 / W))          # target row
    x_t = p - y_t * jnp.float32(W)                             # target col

    xs = x_t + f[0:1, :]                       # sample x position
    ys = y_t + f[1:2, :]                       # sample y position

    # Separable bilinear weights; zero outside the image == zeros padding.
    col = jax.lax.broadcasted_iota(jnp.int32, (W, tile), 0).astype(jnp.float32)
    row = jax.lax.broadcasted_iota(jnp.int32, (H, tile), 0).astype(jnp.float32)
    kxT = jnp.maximum(0.0, 1.0 - jnp.abs(xs - col))            # (W, tile)
    kyT = jnp.maximum(0.0, 1.0 - jnp.abs(ys - row))            # (H, tile)

    # x-contraction on the MXU, y-contraction on the VPU/XLU.
    t = jnp.dot(m2, kxT, preferred_element_type=jnp.float32)   # (M*H, tile)
    w1 = jnp.sum(t.reshape(M, H, tile) * kyT[None, :, :], axis=1)   # (M, tile)

    if norm == 1:
        dist = notocc * jnp.abs(w1 - m1)
    elif norm == 2:
        d = w1 - m1
        dist = notocc * (d * d)
    else:  # 'xent'  (note: the reference applies no occlusion mask here)
        dist = (-w1 * jnp.log(m1 + jnp.float32(1e-8))
                - (1.0 - w1) * jnp.log(1.0 - m1 + jnp.float32(1e-8)))

    out_ref[...] += jnp.sum(dist).reshape(1, 1, 1)


def _pick_tile(HW, max_tile):
    """Largest multiple of 128 that divides HW and is <= max_tile."""
    if HW % 128 != 0:
        return HW                      # full-extent block (always legal)
    cap = max(128, (max_tile // 128) * 128)
    for t in range(cap, 127, -128):
        if HW % t == 0:
            return t
    return 128


def mask_warp_loss_pallas(m1, m2, flow, notocc, *, weight, norm, max_tile=2048):
    """m1, m2: (B, M, H, W);  flow: (B, H, W, 2) (dx, dy);  notocc: (B, 1, H, W)."""
    B, M, H, W = m1.shape
    HW = H * W
    tile = _pick_tile(HW, max_tile)
    n_chunks = HW // tile

    # Lane-dense layout plumbing (HW on the last / lane axis).
    m1_r = jnp.asarray(m1, jnp.float32).reshape(B, M, HW)
    m2_r = jnp.asarray(m2, jnp.float32).reshape(B, M * H, W)
    flow_r = jnp.moveaxis(jnp.asarray(flow, jnp.float32), -1, 1).reshape(B, 2, HW)
    notocc_r = jnp.asarray(notocc, jnp.float32).reshape(B, 1, HW)

    # Explicit scoped-VMEM budget (inputs are double-buffered, plus live temps).
    in_block_bytes = 4 * (M * H * W + 2 * tile + M * tile + tile)
    live_bytes = 4 * ((W + H) * tile + M * H * tile + 3 * M * tile)
    vmem_limit = int(min(64 * 1024 * 1024,
                         max(32 * 1024 * 1024, 4 * in_block_bytes + 2 * live_bytes)))

    grid_spec = pltpu.PrefetchScalarGridSpec(
        num_scalar_prefetch=0,
        grid=(B, n_chunks),
        in_specs=[
            pl.BlockSpec((1, M * H, W), lambda b, c: (b, 0, 0)),   # M2 (resident per b)
            pl.BlockSpec((1, 2, tile), lambda b, c: (b, 0, c)),    # flow chunk
            pl.BlockSpec((1, M, tile), lambda b, c: (b, 0, c)),    # M1 chunk
            pl.BlockSpec((1, 1, tile), lambda b, c: (b, 0, c)),    # ~occ chunk
        ],
        out_specs=pl.BlockSpec((1, 1, 1), lambda b, c: (b, 0, 0)),  # per-batch partial
    )
    partials = pl.pallas_call(
        partial(_mask_warp_kernel, H=H, W=W, M=M, norm=norm, tile=tile),
        out_shape=jax.ShapeDtypeStruct((B, 1, 1), jnp.float32),
        grid_spec=grid_spec,
        compiler_params=pltpu.CompilerParams(
            dimension_semantics=("parallel", "arbitrary"),
            vmem_limit_bytes=vmem_limit),
    )(m2_r, flow_r, m1_r, notocc_r)

    return jnp.float32(weight) * jnp.sum(partials) / jnp.float32(B * M * H * W)


# --------------------------------------------------------------------------- #
# Pure-JAX reference (4-corner gather formulation of the same warp)
# --------------------------------------------------------------------------- #
def _inverse_flow_warp_ref(m2, flow):
    """Bilinear backward warp, zeros padding. m2: (B,M,H,W); flow: (B,H,W,2)."""
    B, M, H, W = m2.shape
    ygrid = jnp.arange(H, dtype=jnp.float32)[:, None]
    xgrid = jnp.arange(W, dtype=jnp.float32)[None, :]
    xs = xgrid + flow[..., 0]
    ys = ygrid + flow[..., 1]
    x0 = jnp.floor(xs)
    y0 = jnp.floor(ys)
    wx1 = xs - x0
    wx0 = 1.0 - wx1
    wy1 = ys - y0
    wy0 = 1.0 - wy1

    def corner(yc, xc, w):
        valid = ((xc >= 0) & (xc <= W - 1) & (yc >= 0) & (yc <= H - 1))
        xi = jnp.clip(xc, 0, W - 1).astype(jnp.int32)
        yi = jnp.clip(yc, 0, H - 1).astype(jnp.int32)
        vals = jax.vmap(lambda img, yy, xx: img[:, yy, xx])(m2, yi, xi)  # (B,M,H,W)
        return vals * (w * valid.astype(jnp.float32))[:, None]

    return (corner(y0, x0, wy0 * wx0) + corner(y0, x0 + 1.0, wy0 * wx1)
            + corner(y0 + 1.0, x0, wy1 * wx0) + corner(y0 + 1.0, x0 + 1.0, wy1 * wx1))


def mask_warp_loss_ref(m1, m2, flow, occ, *, weight, norm):
    w1 = _inverse_flow_warp_ref(m2, flow)
    notocc = jnp.logical_not(occ).astype(jnp.float32)           # (B,1,H,W)
    if norm == 1:
        dist = notocc * jnp.abs(w1 - m1)
    elif norm == 2:
        dist = notocc * jnp.square(w1 - m1)
    else:  # 'xent'
        dist = (-w1 * jnp.log(m1 + 1e-8) - (1.0 - w1) * jnp.log(1.0 - m1 + 1e-8))
    return jnp.float32(weight) * dist.mean()


# --------------------------------------------------------------------------- #
if __name__ == "__main__":
    # MaskWarpLoss hyper-parameters (deterministic, in-script).
    weight, gap = 0.5, 1

    # Small shapes consistent with the forward:
    #   masks (B, M, 1, H, W), flow (B, 2, H, W), occ (B, 1, H, W), ok (B,)
    B_all, Mn, H, W = 3, 4, 16, 16
    key = jax.random.PRNGKey(0)
    k_mask, k_flow, k_occ = jax.random.split(key, 3)

    masks = jax.nn.softmax(
        jax.random.normal(k_mask, (B_all, Mn, 1, H, W), jnp.float32), axis=1)
    flow_all = 3.0 * jax.random.normal(k_flow, (B_all, 2, H, W), jnp.float32)
    occ_all = jax.random.uniform(k_occ, (B_all, 1, H, W)) < 0.2     # bool occ map
    ok_all = np.array([True, True, True])                           # flow validity

    # ---- MaskWarpLoss.forward glue: gap slicing + `ok` selection ------------
    if len(masks) < abs(gap):
        loss = jax.block_until_ready(jnp.zeros((1,), jnp.float32))
        print("KERNEL_OK")
    else:
        ok = ok_all[:-gap]
        F12 = jnp.transpose(flow_all[:-gap], (0, 2, 3, 1))          # (B', H, W, 2)
        O12 = occ_all[:-gap]
        M1 = masks[:-gap, :, 0]
        M2 = masks[gap:, :, 0]
        # TODO(synk): boolean selection `M1[ok]` has a data-dependent shape with
        # no static-shape Pallas equivalent; it is performed here in NumPy/JAX.
        idx = np.nonzero(ok)[0]
        M1, M2, F12, O12 = M1[idx], M2[idx], F12[idx], O12[idx]
        # TODO(synk): utils.inverse_flow_warp internals are not given; assumed to
        # be a bilinear backward warp with zeros padding (occ unused inside it).
        notocc = jnp.logical_not(O12).astype(jnp.float32)

        for norm in (1, 2, "xent"):
            loss = mask_warp_loss_pallas(M1, M2, F12, notocc,
                                         weight=weight, norm=norm,
                                         max_tile=128)   # 2 HW chunks: exercises accumulation
            loss = jax.block_until_ready(loss)
            ref = mask_warp_loss_ref(M1, M2, F12, O12, weight=weight, norm=norm)
            np.testing.assert_allclose(np.asarray(loss), np.asarray(ref),
                                       rtol=2e-4, atol=1e-6)
        print("KERNEL_OK")
</pallas_src>

<mosaic_0001>
module attributes {stable_mosaic.version = 11 : i64} {
  func.func @_mask_warp_kernel(%arg0: i32, %arg1: i32, %arg2: memref<1x64x16xf32, #tpu.memory_space<vmem>>, %arg3: memref<1x2x128xf32, #tpu.memory_space<vmem>>, %arg4: memref<1x4x128xf32, #tpu.memory_space<vmem>>, %arg5: memref<1x1x128xf32, #tpu.memory_space<vmem>>, %arg6: memref<1x1x1xf32, #tpu.memory_space<vmem>>) attributes {dimension_semantics = [#tpu.dimension_semantics<parallel>, #tpu.dimension_semantics<arbitrary>], iteration_bounds = array<i64: 2, 2>, scalar_prefetch = 0 : i64, scratch_operands = 0 : i64, tpu.core_type = #tpu.core_type<tc>, window_params = [{transform_indices = @transform_0, window_bounds = array<i64: 1, 64, 16>}, {transform_indices = @transform_1, window_bounds = array<i64: 1, 2, 128>}, {transform_indices = @transform_2, window_bounds = array<i64: 1, 4, 128>}, {transform_indices = @transform_3, window_bounds = array<i64: 1, 1, 128>}, {transform_indices = @transform_4, window_bounds = array<i64: 1, 1, 1>}]} {
    %c0_i32 = arith.constant 0 : i32
    %0 = arith.cmpi eq, %arg1, %c0_i32 : i32
    %1 = arith.extui %0 : i1 to i32
    %c0_i32_0 = arith.constant 0 : i32
    %2 = arith.cmpi ne, %1, %c0_i32_0 : i32
    scf.if %2 {
      %cst_27 = arith.constant 0.000000e+00 : f32
      %64 = vector.broadcast %cst_27 : f32 to vector<1x1x1xf32>
      %c0_28 = arith.constant 0 : index
      %c0_29 = arith.constant 0 : index
      %c0_30 = arith.constant 0 : index
      %65 = vector.load %arg6[%c0_28, %c0_29, %c0_30] : memref<1x1x1xf32, #tpu.memory_space<vmem>>, vector<1x1x1xf32>
      tpu.vector_store %arg6[%c0_28, %c0_29, %c0_30], %64 {strides = array<i32>} : memref<1x1x1xf32, #tpu.memory_space<vmem>>, vector<1x1x1xf32>,
    } else {
    }
    %c0 = arith.constant 0 : index
    %c0_1 = arith.constant 0 : index
    %c0_2 = arith.constant 0 : index
    %3 = vector.load %arg2[%c0, %c0_1, %c0_2] : memref<1x64x16xf32, #tpu.memory_space<vmem>>, vector<1x64x16xf32>
    %4 = vector.shape_cast %3 : vector<1x64x16xf32> to vector<64x16xf32>
    %c0_3 = arith.constant 0 : index
    %c0_4 = arith.constant 0 : index
    %c0_5 = arith.constant 0 : index
    %5 = vector.load %arg3[%c0_3, %c0_4, %c0_5] : memref<1x2x128xf32, #tpu.memory_space<vmem>>, vector<1x2x128xf32>
    %6 = vector.shape_cast %5 : vector<1x2x128xf32> to vector<2x128xf32>
    %c0_6 = arith.constant 0 : index
    %c0_7 = arith.constant 0 : index
    %c0_8 = arith.constant 0 : index
    %7 = vector.load %arg4[%c0_6, %c0_7, %c0_8] : memref<1x4x128xf32, #tpu.memory_space<vmem>>, vector<1x4x128xf32>
    %8 = vector.shape_cast %7 : vector<1x4x128xf32> to vector<4x128xf32>
    %c0_9 = arith.constant 0 : index
    %c0_10 = arith.constant 0 : index
    %c0_11 = arith.constant 0 : index
    %9 = vector.load %arg5[%c0_9, %c0_10, %c0_11] : memref<1x1x128xf32, #tpu.memory_space<vmem>>, vector<1x1x128xf32>
    %10 = vector.shape_cast %9 : vector<1x1x128xf32> to vector<1x128xf32>
    %11 = tpu.iota {dimensions = array<i32: 1>} : vector<1x128xi32>
    %c128_i32 = arith.constant 128 : i32
    %12 = arith.muli %arg1, %c128_i32 : i32
    %13 = vector.broadcast %12 : i32 to vector<1x128xi32>
    %14 = arith.addi %11, %13 : vector<1x128xi32>
    %15 = arith.sitofp %14 : vector<1x128xi32> to vector<1x128xf32>
    %cst = arith.constant 5.000000e-01 : f32
    %16 = vector.broadcast %cst : f32 to vector<1x128xf32>
    %17 = arith.addf %15, %16 : vector<1x128xf32>
    %cst_12 = arith.constant 6.250000e-02 : f32
    %18 = vector.broadcast %cst_12 : f32 to vector<1x128xf32>
    %19 = arith.mulf %17, %18 : vector<1x128xf32>
    %20 = math.floor %19 : vector<1x128xf32>
    %cst_13 = arith.constant 1.600000e+01 : f32
    %21 = vector.broadcast %cst_13 : f32 to vector<1x128xf32>
    %22 = arith.mulf %20, %21 : vector<1x128xf32>
    %23 = arith.subf %15, %22 : vector<1x128xf32>
    %24 = vector.extract_strided_slice %6 {offsets = [0, 0], sizes = [1, 128], strides = [1, 1]} : vector<2x128xf32> to vector<1x128xf32>
    %25 = arith.addf %23, %24 : vector<1x128xf32>
    %26 = vector.extract_strided_slice %6 {offsets = [1, 0], sizes = [1, 128], strides = [1, 1]} : vector<2x128xf32> to vector<1x128xf32>
    %27 = arith.addf %20, %26 : vector<1x128xf32>
    %28 = tpu.iota {dimensions = array<i32: 0>} : vector<16x128xi32>
    %29 = arith.sitofp %28 : vector<16x128xi32> to vector<16x128xf32>
    %30 = tpu.iota {dimensions = array<i32: 0>} : vector<16x128xi32>
    %31 = arith.sitofp %30 : vector<16x128xi32> to vector<16x128xf32>
    %32 = vector.broadcast %25 : vector<1x128xf32> to vector<16x128xf32>
    %33 = arith.subf %32, %29 : vector<16x128xf32>
    %34 = math.absf %33 : vector<16x128xf32>
    %cst_14 = arith.constant 1.000000e+00 : f32
    %35 = vector.broadcast %cst_14 : f32 to vector<16x128xf32>
    %36 = arith.subf %35, %34 : vector<16x128xf32>
    %cst_15 = arith.constant 0.000000e+00 : f32
    %37 = vector.broadcast %cst_15 : f32 to vector<16x128xf32>
    %38 = arith.maximumf %37, %36 : vector<16x128xf32>
    %39 = vector.broadcast %27 : vector<1x128xf32> to vector<16x128xf32>
    %40 = arith.subf %39, %31 : vector<16x128xf32>
    %41 = math.absf %40 : vector<16x128xf32>
    %cst_16 = arith.constant 1.000000e+00 : f32
    %42 = vector.broadcast %cst_16 : f32 to vector<16x128xf32>
    %43 = arith.subf %42, %41 : vector<16x128xf32>
    %cst_17 = arith.constant 0.000000e+00 : f32
    %44 = vector.broadcast %cst_17 : f32 to vector<16x128xf32>
    %45 = arith.maximumf %44, %43 : vector<16x128xf32>
    %cst_18 = arith.constant dense<0.000000e+00> : vector<64x128xf32>
    %46 = tpu.matmul %4, %38, %cst_18 {dimension_numbers = #tpu.dot_dimension_numbers<[1], [0], [0], [1], [0, 0, 1, 1], [], []>} : vector<64x16xf32>, vector<16x128xf32>, vector<64x128xf32> -> vector<64x128xf32>
    %47 = vector.shape_cast %46 : vector<64x128xf32> to vector<4x16x128xf32>
    %48 = vector.shape_cast %45 : vector<16x128xf32> to vector<1x16x128xf32>
    %49 = vector.broadcast %48 : vector<1x16x128xf32> to vector<4x16x128xf32>
    %50 = arith.mulf %47, %49 : vector<4x16x128xf32>
    %cst_19 = arith.constant dense<0.000000e+00> : vector<4x128xf32>
    %51 = vector.multi_reduction <add>, %50, %cst_19 [1] : vector<4x16x128xf32> to vector<4x128xf32>
    %52 = arith.subf %51, %8 : vector<4x128xf32>
    %53 = math.absf %52 : vector<4x128xf32>
    %54 = vector.broadcast %10 : vector<1x128xf32> to vector<4x128xf32>
    %55 = arith.mulf %54, %53 : vector<4x128xf32>
    %c0_20 = arith.constant 0 : index
    %c0_21 = arith.constant 0 : index
    %c0_22 = arith.constant 0 : index
    %56 = vector.load %arg6[%c0_20, %c0_21, %c0_22] : memref<1x1x1xf32, #tpu.memory_space<vmem>>, vector<1x1x1xf32>
    %57 = vector.shape_cast %55 : vector<4x128xf32> to vector<1x4x128xf32>
    %cst_23 = arith.constant dense<0.000000e+00> : vector<1xf32>
    %58 = vector.multi_reduction <add>, %57, %cst_23 [1, 2] : vector<1x4x128xf32> to vector<1xf32>
    %59 = vector.shape_cast %58 : vector<1xf32> to vector<1x1x1xf32>
    %60 = vector.extract %59[0, 0, 0] : f32 from vector<1x1x1xf32>
    %61 = vector.broadcast %60 : f32 to vector<1x1x1xf32>
    %62 = arith.addf %56, %61 : vector<1x1x1xf32>
    %c0_24 = arith.constant 0 : index
    %c0_25 = arith.constant 0 : index
    %c0_26 = arith.constant 0 : index
    %63 = vector.load %arg6[%c0_24, %c0_25, %c0_26] : memref<1x1x1xf32, #tpu.memory_space<vmem>>, vector<1x1x1xf32>
    tpu.vector_store %arg6[%c0_24, %c0_25, %c0_26], %62 {strides = array<i32>} : memref<1x1x1xf32, #tpu.memory_space<vmem>>, vector<1x1x1xf32>,
    return
  }
  func.func @transform_0(%arg0: i32, %arg1: i32) -> (i32, i32, i32) {
    %c0_i32 = arith.constant 0 : i32
    %c0_i32_0 = arith.constant 0 : i32
    %c0_i32_1 = arith.constant 0 : i32
    return %arg0, %c0_i32, %c0_i32_0 : i32, i32, i32
  }
  func.func @transform_1(%arg0: i32, %arg1: i32) -> (i32, i32, i32) {
    %c0_i32 = arith.constant 0 : i32
    %c0_i32_0 = arith.constant 0 : i32
    return %arg0, %c0_i32, %arg1 : i32, i32, i32
  }
  func.func @transform_2(%arg0: i32, %arg1: i32) -> (i32, i32, i32) {
    %c0_i32 = arith.constant 0 : i32
    %c0_i32_0 = arith.constant 0 : i32
    return %arg0, %c0_i32, %arg1 : i32, i32, i32
  }
  func.func @transform_3(%arg0: i32, %arg1: i32) -> (i32, i32, i32) {
    %c0_i32 = arith.constant 0 : i32
    %c0_i32_0 = arith.constant 0 : i32
    return %arg0, %c0_i32, %arg1 : i32, i32, i32
  }
  func.func @transform_4(%arg0: i32, %arg1: i32) -> (i32, i32, i32) {
    %c0_i32 = arith.constant 0 : i32
    %c0_i32_0 = arith.constant 0 : i32
    %c0_i32_1 = arith.constant 0 : i32
    return %arg0, %c0_i32, %c0_i32_0 : i32, i32, i32
  }
}

</mosaic_0001>

<llo_original>
// kernel: tpu_custom_call.1
$region0: #{tpu_custom_call.1}
  #allocation0 [shape = 'u32[]', space=smem, size = 0x4, offset = 0x4, fixed_abs, tag = 'smem constant byte address 0x4 - core index']
  #allocation1 [shape = 'u32[72,128]{1,0:T(1,128)}', space=vmem, size = 0x9000, scoped, tag = 'internal scratch']
  %s0 = inlined_call_operand.vmem [shape: f32[2,64,16], index: 0, kind: input, shape index: {}]
  %s1 = inlined_call_operand.vmem [shape: f32[2,2,256], index: 1, kind: input, shape index: {}]
  %s2 = inlined_call_operand.vmem [shape: f32[2,4,256], index: 2, kind: input, shape index: {}]
  %s3 = inlined_call_operand.vmem [shape: f32[2,1,256], index: 3, kind: input, shape index: {}]
  %s4 = inlined_call_operand.vmem [shape: f32[2,1,1], index: 4, kind: output, shape index: {}]
  %s5 = sld [smem:[#allocation0]]
  $region53: #{tpu_custom_call.1} parent=0
    _
  %s7 = ssub.s32 1, %s5
  %s8 = scalar_select 0, %s7, %s5
  loop: start=0, step=1, limit=6
  $region2: #{tpu_custom_call.1} parent=0 // loop_pre_header
    _
  $region3: #{tpu_custom_call.1} parent=0 // loop_header
    %s10 = sphi 0, %s14
    %p11 = scmp.ge.s32.totalorder %s10, 6
    %s17 = sphi 0, %s29
    %s18 = sphi 0, %s25
    %s19 = sphi 0, %s17
    %s20 = sphi 0, %s18
    %s21 = sphi 0, %s19
    %s22 = sphi 0, %s20
    %s32 = sphi 0, %s34
    %s35 = sphi 0, %s32
    %s36 = sphi 0, %s35
    %s52 = sphi 0, %s36
    %s60 = sphi 0, %s62
    %s63 = sphi 0, %s60
    %s64 = sphi 0, %s63
    %s80 = sphi 0, %s64
    %s88 = sphi 0, %s90
    %s91 = sphi 0, %s88
    %s92 = sphi 0, %s91
    %s108 = sphi 0, %s92
    %s116 = sphi 0, %s118
    %s119 = sphi 0, %s116
    %s120 = sphi 0, %s119
    %s136 = sphi 0, %s120
    %s142 = sphi 0, %s144
    %s145 = sphi 0, %s142
    %s146 = sphi 0, %s145
    %s162 = sphi 0, %s146
  $region4: #{tpu_custom_call.1} parent=0 // loop_header_branch
    %13 = sbr.rel (%p11) target = $region8
  $region5: #{tpu_custom_call.1} parent=0 // loop_body
    %s15 = ssub.s32 %s10, 1
    %s16 = ssub.s32 %s10, 2
    %s23 = sadd.s32 1, %s18
    %p24 = scmp.ge.s32.totalorder %s23, 2
    %s25 = scalar_select %p24, 0, %s23
    %s26 = sadd.s32 1, %s17
    %s27 = scalar_select %p24, %s26, %s17
    %p28 = scmp.ge.s32.totalorder %s27, 2
    %s29 = scalar_select %p28, 0, %s27
    %s30 = ssub.s32 %s17, %s29
    %p31 = scmp.eq.s32.totalorder %s30, 0
    %s33 = sadd.s32 %s32, 1
    %s34 = scalar_select %p31, %s32, %s33
    %p37 = pneg %p31
    %p38 = scmp.eq.s32.totalorder %s10, 3
    %p39 = por %p37, %p38
    %p40 = scmp.ne.s32.totalorder %s32, %s35
    %p41 = scmp.eq.s32.totalorder %s10, 0
    %p42 = por %p40, %p41
    %p43 = scmp.ne.s32.totalorder %s32, %s35
    %p44 = scmp.eq.s32.totalorder %s15, 3
    %p45 = por %p43, %p44
    %p46 = scmp.ne.s32.totalorder %s35, %s36
    %p47 = scmp.eq.s32.totalorder %s15, 0
    %p48 = por %p46, %p47
    %p49 = scmp.ne.s32.totalorder %s35, %s36
    %p50 = scmp.eq.s32.totalorder %s16, 3
    %p51 = por %p49, %p50
    %p53 = scmp.ne.s32.totalorder %s36, %s52
    %p54 = scmp.eq.s32.totalorder %s16, 0
    %p55 = por %p53, %p54
    %s56 = ssub.s32 %s17, %s29
    %s57 = ssub.s32 %s18, %s25
    %s58 = sor.u32 %s56, %s57
    %p59 = scmp.eq.s32.totalorder %s58, 0
    %s61 = sadd.s32 %s60, 1
    %s62 = scalar_select %p59, %s60, %s61
    %p65 = pneg %p59
    %p66 = scmp.eq.s32.totalorder %s10, 3
    %p67 = por %p65, %p66
    %p68 = scmp.ne.s32.totalorder %s60, %s63
    %p69 = scmp.eq.s32.totalorder %s10, 0
    %p70 = por %p68, %p69
    %p71 = scmp.ne.s32.totalorder %s60, %s63
    %p72 = scmp.eq.s32.totalorder %s15, 3
    %p73 = por %p71, %p72
    %p74 = scmp.ne.s32.totalorder %s63, %s64
    %p75 = scmp.eq.s32.totalorder %s15, 0
    %p76 = por %p74, %p75
    %p77 = scmp.ne.s32.totalorder %s63, %s64
    %p78 = scmp.eq.s32.totalorder %s16, 3
    %p79 = por %p77, %p78
    %p81 = scmp.ne.s32.totalorder %s64, %s80
    %p82 = scmp.eq.s32.totalorder %s16, 0
    %p83 = por %p81, %p82
    %s84 = ssub.s32 %s17, %s29
    %s85 = ssub.s32 %s18, %s25
    %s86 = sor.u32 %s84, %s85
    %p87 = scmp.eq.s32.totalorder %s86, 0
    %s89 = sadd.s32 %s88, 1
    %s90 = scalar_select %p87, %s88, %s89
    %p93 = pneg %p87
    %p94 = scmp.eq.s32.totalorder %s10, 3
    %p95 = por %p93, %p94
    %p96 = scmp.ne.s32.totalorder %s88, %s91
    %p97 = scmp.eq.s32.totalorder %s10, 0
    %p98 = por %p96, %p97
    %p99 = scmp.ne.s32.totalorder %s88, %s91
    %p100 = scmp.eq.s32.totalorder %s15, 3
    %p101 = por %p99, %p100
    %p102 = scmp.ne.s32.totalorder %s91, %s92
    %p103 = scmp.eq.s32.totalorder %s15, 0
    %p104 = por %p102, %p103
    %p105 = scmp.ne.s32.totalorder %s91, %s92
    %p106 = scmp.eq.s32.totalorder %s16, 3
    %p107 = por %p105, %p106
    %p109 = scmp.ne.s32.totalorder %s92, %s108
    %p110 = scmp.eq.s32.totalorder %s16, 0
    %p111 = por %p109, %p110
    %s112 = ssub.s32 %s17, %s29
    %s113 = ssub.s32 %s18, %s25
    %s114 = sor.u32 %s112, %s113
    %p115 = scmp.eq.s32.totalorder %s114, 0
    %s117 = sadd.s32 %s116, 1
    %s118 = scalar_select %p115, %s116, %s117
    %p121 = pneg %p115
    %p122 = scmp.eq.s32.totalorder %s10, 3
    %p123 = por %p121, %p122
    %p124 = scmp.ne.s32.totalorder %s116, %s119
    %p125 = scmp.eq.s32.totalorder %s10, 0
    %p126 = por %p124, %p125
    %p127 = scmp.ne.s32.totalorder %s116, %s119
    %p128 = scmp.eq.s32.totalorder %s15, 3
    %p129 = por %p127, %p128
    %p130 = scmp.ne.s32.totalorder %s119, %s120
    %p131 = scmp.eq.s32.totalorder %s15, 0
    %p132 = por %p130, %p131
    %p133 = scmp.ne.s32.totalorder %s119, %s120
    %p134 = scmp.eq.s32.totalorder %s16, 3
    %p135 = por %p133, %p134
    %p137 = scmp.ne.s32.totalorder %s120, %s136
    %p138 = scmp.eq.s32.totalorder %s16, 0
    %p139 = por %p137, %p138
    %s140 = ssub.s32 %s17, %s29
    %p141 = scmp.eq.s32.totalorder %s140, 0
    %s143 = sadd.s32 %s142, 1
    %s144 = scalar_select %p141, %s142, %s143
    %p147 = pneg %p141
    %p148 = scmp.eq.s32.totalorder %s10, 3
    %p149 = por %p147, %p148
    %p150 = scmp.ne.s32.totalorder %s142, %s145
    %p151 = scmp.eq.s32.totalorder %s10, 0
    %p152 = por %p150, %p151
    %p153 = scmp.ne.s32.totalorder %s142, %s145
    %p154 = scmp.eq.s32.totalorder %s15, 3
    %p155 = por %p153, %p154
    %p156 = scmp.ne.s32.totalorder %s145, %s146
    %p157 = scmp.eq.s32.totalorder %s15, 0
    %p158 = por %p156, %p157
    %p159 = scmp.ne.s32.totalorder %s145, %s146
    %p160 = scmp.eq.s32.totalorder %s16, 3
    %p161 = por %p159, %p160
    %p163 = scmp.ne.s32.totalorder %s146, %s162
    %p164 = scmp.eq.s32.totalorder %s16, 0
    %p165 = por %p163, %p164
    %p166 = scmp.le.s32.totalorder 1, %s10
    %p167 = scmp.lt.s32.totalorder %s10, 5
    %p168 = pnand %p166, %p167
    %p169 = pneg %p168
    // Predicated region
    $region9: #{tpu_custom_call.1} parent=5 // pred_check
      _
    $region10: #{tpu_custom_call.1} parent=5 // pred_check_branch
      %171 = sbr.rel (%p168) target = $region12
    $region11: #{tpu_custom_call.1} parent=5 // pred_region
      %s172 = ssub.s32 %s10, 1
    $region12: #{tpu_custom_call.1} parent=5 // pred_fallthru
      _
    %p173 = scmp.lt.s32.totalorder %s10, 4
    // Predicated region
    $region13: #{tpu_custom_call.1} parent=5 // pred_check
      %p174 = pneg %p173
    $region14: #{tpu_custom_call.1} parent=5 // pred_check_branch
      %176 = sbr.rel (%p174) target = $region16
    $region15: #{tpu_custom_call.1} parent=5 // pred_region
      // Predicated region
      $region17: #{tpu_custom_call.1} parent=15 // pred_check
        %p177 = pneg %p42
      $region18: #{tpu_custom_call.1} parent=15 // pred_check_branch
        %179 = sbr.rel (%p177) target = $region20
      $region19: #{tpu_custom_call.1} parent=15 // pred_region
        %p180 = scmp.lt.s32.totalorder %s17, 1
        %s181 = scalar_select %p180, %s17, 1
        %s182 = smul.addr %s181, 8
        %s183 = smul.addr %s182, 8
        %s184 = scalar_lea.vmem %s0, %s183
      $region20: #{tpu_custom_call.1} parent=15 // pred_fallthru
        _
      // Predicated region
      $region21: #{tpu_custom_call.1} parent=15 // pred_check
        %p185 = pneg %p70
      $region22: #{tpu_custom_call.1} parent=15 // pred_check_branch
        %187 = sbr.rel (%p185) target = $region24
      $region23: #{tpu_custom_call.1} parent=15 // pred_region
        %p188 = scmp.lt.s32.totalorder %s17, 1
        %s189 = scalar_select %p188, %s17, 1
        %p190 = scmp.lt.s32.totalorder %s18, 1
        %s191 = scalar_select %p190, %s18, 1
        %s192 = smul.addr %s189, 2
        %s193 = sadd.s32 %s191, %s192
        %s194 = smul.addr %s193, 2
        %s195 = scalar_lea.vmem %s1, %s194
      $region24: #{tpu_custom_call.1} parent=15 // pred_fallthru
        _
      // Predicated region
      $region25: #{tpu_custom_call.1} parent=15 // pred_check
        %p196 = pneg %p98
      $region26: #{tpu_custom_call.1} parent=15 // pred_check_branch
        %198 = sbr.rel (%p196) target = $region28
      $region27: #{tpu_custom_call.1} parent=15 // pred_region
        %p199 = scmp.lt.s32.totalorder %s17, 1
        %s200 = scalar_select %p199, %s17, 1
        %p201 = scmp.lt.s32.totalorder %s18, 1
        %s202 = scalar_select %p201, %s18, 1
        %s203 = smul.addr %s200, 2
        %s204 = sadd.s32 %s202, %s203
        %s205 = smul.addr %s204, 4
        %s206 = scalar_lea.vmem %s2, %s205
      $region28: #{tpu_custom_call.1} parent=15 // pred_fallthru
        _
      // Predicated region
      $region29: #{tpu_custom_call.1} parent=15 // pred_check
        %p207 = pneg %p126
      $region30: #{tpu_custom_call.1} parent=15 // pred_check_branch
        %209 = sbr.rel (%p207) target = $region32
      $region31: #{tpu_custom_call.1} parent=15 // pred_region
        %p210 = scmp.lt.s32.totalorder %s17, 1
        %s211 = scalar_select %p210, %s17, 1
        %p212 = scmp.lt.s32.totalorder %s18, 1
        %s213 = scalar_select %p212, %s18, 1
        %s214 = smul.addr %s211, 2
        %s215 = sadd.s32 %s213, %s214
        %s216 = scalar_lea.vmem %s3, %s215
      $region32: #{tpu_custom_call.1} parent=15 // pred_fallthru
        _
    $region16: #{tpu_custom_call.1} parent=5 // pred_fallthru
      _
    %p217 = scmp.le.s32.totalorder 1, %s10
    %p218 = scmp.lt.s32.totalorder %s10, 5
    %p219 = pnand %p217, %p218
    %p220 = pneg %p219
    // Predicated region
    $region33: #{tpu_custom_call.1} parent=5 // pred_check
      _
    $region34: #{tpu_custom_call.1} parent=5 // pred_check_branch
      %222 = sbr.rel (%p219) target = $region36
    $region35: #{tpu_custom_call.1} parent=5 // pred_region
      %s223 = ssub.s32 %s10, 1
      %p224 = scmp.lt.s32.totalorder %s19, 1
      %s225 = scalar_select %p224, %s19, 1
      %s226 = smul.addr %s225, 8
      %s227 = smul.addr %s226, 8
      %s228 = scalar_lea.vmem %s0, %s227
      %p229 = pneg %p48
      %p230 = pneg %p45
      %p231 = scmp.lt.s32.totalorder %s19, 1
      %s232 = scalar_select %p231, %s19, 1
      %p233 = scmp.lt.s32.totalorder %s20, 1
      %s234 = scalar_select %p233, %s20, 1
      %s235 = smul.addr %s232, 2
      %s236 = sadd.s32 %s234, %s235
      %s237 = smul.addr %s236, 2
      %s238 = scalar_lea.vmem %s1, %s237
      %p239 = pneg %p76
      %p240 = pneg %p73
      %p241 = scmp.lt.s32.totalorder %s19, 1
      %s242 = scalar_select %p241, %s19, 1
      %p243 = scmp.lt.s32.totalorder %s20, 1
      %s244 = scalar_select %p243, %s20, 1
      %s245 = smul.addr %s242, 2
      %s246 = sadd.s32 %s244, %s245
      %s247 = smul.addr %s246, 4
      %s248 = scalar_lea.vmem %s2, %s247
      %p249 = pneg %p104
      %p250 = pneg %p101
      %p251 = scmp.lt.s32.totalorder %s19, 1
      %s252 = scalar_select %p251, %s19, 1
      %p253 = scmp.lt.s32.totalorder %s20, 1
      %s254 = scalar_select %p253, %s20, 1
      %s255 = smul.addr %s252, 2
      %s256 = sadd.s32 %s254, %s255
      %s257 = scalar_lea.vmem %s3, %s256
      %p258 = pneg %p132
      %p259 = pneg %p129
      %p260 = pneg %p158
      %p261 = pneg %p155
      %p262 = scmp.lt.s32.totalorder %s19, 1
      %s263 = scalar_select %p262, %s19, 1
      %s264 = scalar_lea.vmem %s4, %s263
      %p265 = scmp.lt.s32.totalorder %s19, 1
      %s266 = scalar_select %p265, %s19, 1
      %s267 = smul.addr %s266, 8
      %s268 = smul.addr %s267, 8
      %s269 = scalar_lea.vmem %s0, %s268
      %p270 = scmp.lt.s32.totalorder %s19, 1
      %s271 = scalar_select %p270, %s19, 1
      %p272 = scmp.lt.s32.totalorder %s20, 1
      %s273 = scalar_select %p272, %s20, 1
      %s274 = smul.addr %s271, 2
      %s275 = sadd.s32 %s273, %s274
      %s276 = smul.addr %s275, 2
      %s277 = scalar_lea.vmem %s1, %s276
      %p278 = scmp.lt.s32.totalorder %s19, 1
      %s279 = scalar_select %p278, %s19, 1
      %p280 = scmp.lt.s32.totalorder %s20, 1
      %s281 = scalar_select %p280, %s20, 1
      %s282 = smul.addr %s279, 2
      %s283 = sadd.s32 %s281, %s282
      %s284 = smul.addr %s283, 4
      %s285 = scalar_lea.vmem %s2, %s284
      %p286 = scmp.lt.s32.totalorder %s19, 1
      %s287 = scalar_select %p286, %s19, 1
      %p288 = scmp.lt.s32.totalorder %s20, 1
      %s289 = scalar_select %p288, %s20, 1
      %s290 = smul.addr %s287, 2
      %s291 = sadd.s32 %s289, %s290
      %s292 = scalar_lea.vmem %s3, %s291
      %p293 = scmp.lt.s32.totalorder %s19, 1
      %s294 = scalar_select %p293, %s19, 1
      %s295 = scalar_lea.vmem %s4, %s294
      %p296 = scmp.eq.s32.totalorder %s20, 0
      // Predicated region
      $region37: #{tpu_custom_call.1} parent=35 // pred_check
        %p297 = pneg %p296
      $region38: #{tpu_custom_call.1} parent=35 // pred_check_branch
        %299 = sbr.rel (%p297) target = $region40
      $region39: #{tpu_custom_call.1} parent=35 // pred_region
        %vm300 = vcmask 0
        %301 = vst.msk [vmem:[%s295] sm:$0x1] %vm300, 0.0
      $region40: #{tpu_custom_call.1} parent=35 // pred_fallthru
        _
      %v302 = vld [vmem:[%s269] sm:$0xff]
      %v303 = vld [vmem:[%s269 + $0x8] sm:$0xff]
      %v304 = vld [vmem:[%s269 + $0x10] sm:$0xff]
      %v305 = vld [vmem:[%s269 + $0x18] sm:$0xff]
      %v306 = vld [vmem:[%s269 + $0x20] sm:$0xff]
      %v307 = vld [vmem:[%s269 + $0x28] sm:$0xff]
      %v308 = vld [vmem:[%s269 + $0x30] sm:$0xff]
      %v309 = vld [vmem:[%s269 + $0x38] sm:$0xff]
      %v310 = vld [vmem:[%s277] sm:$0x3]
      %v311 = vld [vmem:[%s285] sm:$0xf]
      %v312 = vld [vmem:[%s292] sm:$0x1]
      %v313 = vlaneseq
      %v314 = vand.u32 %v313, 127
      %s315 = smul.u32 %s20, 128
      %v316 = vstv %s315
      %v317 = vadd.s32 %v314, %v316
      %v318 = vcvt.s32.f32 %v317
      %v319 = vadd.f32 %v318, 0.5
      %v320 = vmul.f32 %v319, 0.0625
      %v321 = vfloor.f32 %v320
      %v322 = vmul.f32 %v321, 16.0
      %v323 = vsub.f32 %v318, %v322
      %v324 = vadd.f32 %v323, %v310
      %v325 = vadd.f32 %v321, %v310
      %v326 = vlaneseq
      %v327 = vshrl.u32 %v326, 7
      %v328 = vadd.s32 %v327, 8
      %v329 = vcvt.s32.f32 %v327
      %v330 = vcvt.s32.f32 %v328
      %v331 = vperm.slane %v324, 0
      %v332 = vsub.f32 %v331, %v329
      %v333 = vsub.f32 %v331, %v330
      %v334 = vand.u32 2147483647, %v332
      %v335 = vand.u32 2147483647, %v333
      %v336 = vsub.f32 1.0, %v334
      %v337 = vsub.f32 1.0, %v335
      %v338 = vmax.f32 %v336, 0.0
      %v339 = vmax.f32 %v337, 0.0
      %v340 = vperm.slane %v325, 1
      %v341 = vsub.f32 %v340, %v329
      %v342 = vsub.f32 %v340, %v330
      %v343 = vand.u32 2147483647, %v341
      %v344 = vand.u32 2147483647, %v342
      %v345 = vsub.f32 1.0, %v343
      %v346 = vsub.f32 1.0, %v344
      %v347 = vmax.f32 %v345, 0.0
      %v348 = vmax.f32 %v346, 0.0
      %vm349 = vcmask 130048
      %v351 = vsel %vm349, %v302, 0
      %v354 = vsel %vm349, %v303, 0
      %v357 = vsel %vm349, %v304, 0
      %v360 = vsel %vm349, %v305, 0
      %v363 = vsel %vm349, %v306, 0
      %v366 = vsel %vm349, %v307, 0
      %v369 = vsel %vm349, %v308, 0
      %v372 = vsel %vm349, %v309, 0
      %374 = vmatpush.msra.mxu0 0.0
      %375 = vmatpush.msra.mxu0 0.0
      %376 = vmatpush.msra.mxu0 0.0
      %377 = vmatpush.msra.mxu0 0.0
      %378 = vmatpush.msra.mxu0 0.0
      %379 = vmatpush.msra.mxu0 0.0
      %380 = vmatpush.msra.mxu0 0.0
      %381 = vmatpush.msra.mxu0 0.0
      %382 = vmatpush.msra.mxu0 0.0
      %383 = vmatpush.msra.mxu0 0.0
      %384 = vmatpush.msra.mxu0 0.0
      %385 = vmatpush.msra.mxu0 0.0
      %386 = vmatpush.msra.mxu0 0.0
      %387 = vmatpush.msra.mxu0 0.0
      %388 = vmatpush.msra.mxu0 %v339
      %389 = vmatpush.msra.mxu0 %v338
      %390 = vmatmul.f32.gmra.mxu0 %v351
      %v391 = vpop.f32.mrf.mxu0
      %v392 = vadd.f32 0.0, %v391
      %393 = vmatmul.f32.gmra.mxu0 %v354
      %v394 = vpop.f32.mrf.mxu0
      %v395 = vadd.f32 0.0, %v394
      %396 = vmatmul.f32.gmra.mxu0 %v357
      %v397 = vpop.f32.mrf.mxu0
      %v398 = vadd.f32 0.0, %v397
      %399 = vmatmul.f32.gmra.mxu0 %v360
      %v400 = vpop.f32.mrf.mxu0
      %v401 = vadd.f32 0.0, %v400
      %402 = vmatmul.f32.gmra.mxu0 %v363
      %v403 = vpop.f32.mrf.mxu0
      %v404 = vadd.f32 0.0, %v403
      %405 = vmatmul.f32.gmra.mxu0 %v366
      %v406 = vpop.f32.mrf.mxu0
      %v407 = vadd.f32 0.0, %v406
      %408 = vmatmul.f32.gmra.mxu0 %v369
      %v409 = vpop.f32.mrf.mxu0
      %v410 = vadd.f32 0.0, %v409
      %411 = vmatmul.f32.gmra.mxu0 %v372
      %v412 = vpop.f32.mrf.mxu0
      %v413 = vadd.f32 0.0, %v412
      %414 = vdwg.mxu0
      %v415 = vmul.f32 %v392, %v347
      %v416 = vmul.f32 %v395, %v348
      %v417 = vmul.f32 %v398, %v347
      %v418 = vmul.f32 %v401, %v348
      %v419 = vmul.f32 %v404, %v347
      %v420 = vmul.f32 %v407, %v348
      %v421 = vmul.f32 %v410, %v347
      %v422 = vmul.f32 %v413, %v348
      %v423 = vadd.f32 %v415, %v416
      %v424 = vrot.slane %v423, 4
      %v425 = vadd.f32 %v423, %v424
      %v426 = vrot.slane %v425, 2
      %v427 = vadd.f32 %v425, %v426
      %v428 = vrot.slane %v427, 1
      %v429 = vadd.f32 %v427, %v428
      %v430 = vadd.f32 %v417, %v418
      %v431 = vrot.slane %v430, 4
      %v432 = vadd.f32 %v430, %v431
      %v433 = vrot.slane %v432, 2
      %v434 = vadd.f32 %v432, %v433
      %v435 = vrot.slane %v434, 1
      %v436 = vadd.f32 %v434, %v435
      %v437 = vadd.f32 %v419, %v420
      %v438 = vrot.slane %v437, 4
      %v439 = vadd.f32 %v437, %v438
      %v440 = vrot.slane %v439, 2
      %v441 = vadd.f32 %v439, %v440
      %v442 = vrot.slane %v441, 1
      %v443 = vadd.f32 %v441, %v442
      %v444 = vadd.f32 %v421, %v422
      %v445 = vrot.slane %v444, 4
      %v446 = vadd.f32 %v444, %v445
      %v447 = vrot.slane %v446, 2
      %v448 = vadd.f32 %v446, %v447
      %v449 = vrot.slane %v448, 1
      %v450 = vadd.f32 %v448, %v449
      %v452 = vrot.slane %v311, 1
      %v453 = vrot.slane %v311, 2
      %v454 = vrot.slane %v311, 3
      %v459 = vsub.f32 %v429, %v311
      %v460 = vsub.f32 %v436, %v452
      %v461 = vsub.f32 %v443, %v453
      %v462 = vsub.f32 %v450, %v454
      %v463 = vand.u32 2147483647, %v459
      %v464 = vand.u32 2147483647, %v460
      %v465 = vand.u32 2147483647, %v461
      %v466 = vand.u32 2147483647, %v462
      %v468 = vperm.slane %v312, 0
      %v474 = vrot.slane %v464, 7
      %vm475 = vcmask 1041409
      %v476 = vsel %vm475, %v474, %v463
      %v477 = vrot.slane %v465, 6
      %vm478 = vcmask 1042434
      %v479 = vsel %vm478, %v477, %v476
      %v480 = vrot.slane %v466, 5
      %vm481 = vcmask 1043459
      %v482 = vsel %vm481, %v480, %v479
      %v484 = vmul.f32 %v468, %v482
      %v485 = vld [vmem:[%s295] sm:$0x1]
      %vm486 = vcmask 1043456
      %v487 = vsel %vm486, %v484, 0.0
      %488 = vadd.xlane.f32.xlu0 %v487
      %v489 = vpop.xlane.xlu0 %488
      %v490 = vrot.slane %v489, 4
      %v491 = vadd.f32 %v489, %v490
      %v492 = vrot.slane %v491, 2
      %v493 = vadd.f32 %v491, %v492
      %v494 = vrot.slane %v493, 1
      %v495 = vadd.f32 %v493, %v494
      %s496 = vtos %v495
      %v497 = vstv %s496
      %v498 = vadd.f32 %v485, %v497
      %vm499 = vcmask 0
      %500 = vst.msk [vmem:[%s295] sm:$0x1] %vm499, %v498
      %p501 = scmp.lt.s32.totalorder %s19, 1
      %s502 = scalar_select %p501, %s19, 1
      %s503 = scalar_lea.vmem %s4, %s502
      // Predicated region
      $region41: #{tpu_custom_call.1} parent=35 // pred_check
        %p504 = pneg %p155
      $region42: #{tpu_custom_call.1} parent=35 // pred_check_branch
        %506 = sbr.rel (%p504) target = $region44
      $region43: #{tpu_custom_call.1} parent=35 // pred_region
        _
      $region44: #{tpu_custom_call.1} parent=35 // pred_fallthru
        _
    $region36: #{tpu_custom_call.1} parent=5 // pred_fallthru
      _
    %p507 = scmp.le.s32.totalorder 2, %s10
    // Predicated region
    $region45: #{tpu_custom_call.1} parent=5 // pred_check
      %p508 = pneg %p507
    $region46: #{tpu_custom_call.1} parent=5 // pred_check_branch
      %510 = sbr.rel (%p508) target = $region48
    $region47: #{tpu_custom_call.1} parent=5 // pred_region
      %s511 = ssub.s32 %s10, 2
      // Predicated region
      $region49: #{tpu_custom_call.1} parent=47 // pred_check
        %p512 = pneg %p161
      $region50: #{tpu_custom_call.1} parent=47 // pred_check_branch
        %514 = sbr.rel (%p512) target = $region52
      $region51: #{tpu_custom_call.1} parent=47 // pred_region
        %p515 = scmp.lt.s32.totalorder %s21, 1
        %s516 = scalar_select %p515, %s21, 1
        %s517 = scalar_lea.vmem %s4, %s516
      $region52: #{tpu_custom_call.1} parent=47 // pred_fallthru
        _
    $region48: #{tpu_custom_call.1} parent=5 // pred_fallthru
      _
  $region6: #{tpu_custom_call.1} parent=0 // loop_footer
    %s14 = sadd.s32 1, %s10
  $region7: #{tpu_custom_call.1} parent=0 // loop_footer_branch
    %9 = sbr.rel target = $region3
  $region8: #{tpu_custom_call.1} parent=0 // loop_exit
    _

</llo_original>
